<compile_context>
chip_gen: v5e
topology: v5e:2x2
jax: 0.10.0
libtpu: 0.0.40
codegen_flags: <defaults>
</compile_context>

<pallas_src>
import functools

import jax
import jax.numpy as jnp
from jax.experimental import pallas as pl
from jax.experimental.pallas import tpu as pltpu


def _residual_block_kernel(xcat_ref, w1_ref, b1_ref, w2_ref, b2_ref, mask_ref,
                           o_ref):
    """One grid step = one stack of samples laid out along the sublane axis.

    xcat_ref : (1, M, K1*W*Cin) bf16  lane-concat of K1 row-shifted input slabs
    w1_ref   : (K1*W*Cin, W*C1 + W*C2) bf16  [banded conv1 | embedded 1x1 shortcut]
    b1_ref   : (1, W*C1) f32
    w2_ref   : (K2*W*C1, W*C2) bf16   banded conv2 stacked over the K2 row taps
    b2_ref   : (1, W*C2) f32
    mask_ref : (M, 1) f32             1.0 on data rows, 0.0 on halo/pad rows
    o_ref    : (1, M, W*C2) f32       lane-dense output row slabs
    """
    M = o_ref.shape[1]
    WC1 = b1_ref.shape[1]
    K2 = w2_ref.shape[0] // WC1
    P2 = (K2 - 1) // 2

    # ---- fused dot #1: conv1 pre-activation + 1x1 shortcut (one MXU dispatch)
    out1 = jnp.dot(xcat_ref[0], w1_ref[...], preferred_element_type=jnp.float32)
    act1 = jnp.maximum(out1[:, :WC1] + b1_ref[...], 0.0)      # f32 VPU work
    act1 = act1 * mask_ref[...]          # zero halo rows -> SAME padding for conv2
    shortcut = out1[:, WC1:]                                   # (M, W*C2) f32

    # ---- fused dot #2: conv2 as one wide-contraction matmul over the
    #      lane-concat of the K2 row-shifted copies of act1 (in-vreg XLU rolls;
    #      rotated-in rows only ever land on discarded halo rows).
    pieces = []
    for dy in range(K2):
        sh = (P2 - dy) % M               # shifted[r] = act1[r + dy - P2]
        pieces.append(act1 if sh == 0 else pltpu.roll(act1, sh, 0))
    lhs2 = jnp.concatenate(pieces, axis=1).astype(jnp.bfloat16)
    acc2 = jnp.dot(lhs2, w2_ref[...], preferred_element_type=jnp.float32)

    o_ref[0] = jnp.maximum(acc2 + shortcut + b2_ref[...], 0.0).astype(o_ref.dtype)


def _banded_conv_weights(w_hwio, W):
    """(K, K, Cin, Cout) HWIO -> (K, W*Cin, W*Cout) banded per-row-tap matrices.

    Entry [dy, wp*Cin + i, wo*Cout + o] = w[dy, wp - wo + P, i, o] for in-range
    taps; out-of-range taps are dropped (== SAME zero padding along W).
    """
    K, _, Cin, Cout = w_hwio.shape
    P = (K - 1) // 2
    wp = jnp.arange(W)[:, None]            # source (input) column
    wo = jnp.arange(W)[None, :]            # destination (output) column
    dx = wp - wo + P                       # kernel tap feeding wp -> wo
    valid = (dx >= 0) & (dx < K)
    dx_c = jnp.clip(dx, 0, K - 1)
    blocks = w_hwio[:, dx_c] * valid[None, :, :, None, None].astype(w_hwio.dtype)
    # (K, wp, wo, Cin, Cout) -> (K, wp, Cin, wo, Cout) -> (K, W*Cin, W*Cout)
    return blocks.transpose(0, 1, 3, 2, 4).reshape(K, W * Cin, W * Cout)


def pack_residual_block_params(w1, b1, w2, b2, wsc, W):
    """Precompute (once, outside the per-call path) the banded/stacked bf16
    weight matrices and lane-tiled f32 biases."""
    K1, _, Cin, C1 = w1.shape
    K2, _, _, C2 = w2.shape
    P1 = (K1 - 1) // 2
    WCin, WC1, WC2 = W * Cin, W * C1, W * C2

    w1b = _banded_conv_weights(w1, W).reshape(K1 * WCin, WC1)
    w2b = _banded_conv_weights(w2, W).reshape(K2 * WC1, WC2)
    wscb = jnp.kron(jnp.eye(W, dtype=wsc.dtype), wsc)          # (W*Cin, W*C2)
    # Embed the 1x1 shortcut as extra output columns of dot #1: only the rows
    # belonging to the un-shifted (dy == P1) input slab are nonzero.
    sc_cols = jnp.zeros((K1 * WCin, WC2), w1.dtype)
    sc_cols = sc_cols.at[P1 * WCin:(P1 + 1) * WCin, :].set(wscb)

    w1s = jnp.concatenate([w1b, sc_cols], axis=1).astype(jnp.bfloat16)
    w2s = w2b.astype(jnp.bfloat16)
    b1r = jnp.tile(b1, W).reshape(1, WC1).astype(jnp.float32)
    b2r = jnp.tile(b2, W).reshape(1, WC2).astype(jnp.float32)
    return w1s, b1r, w2s, b2r


def _round_up(x, m):
    return (x + m - 1) // m * m


def _choose_batch_per_step(N, Hs, max_rows=512):
    """Largest per-step sample stack that still leaves a >=2-way grid
    (keeps both v7x TensorCores busy) and a modest sublane extent."""
    best = 1
    for bs in range(1, N + 1):
        if N % bs:
            continue
        if N >= 2 and N // bs < 2:
            continue
        if bs * Hs > max_rows:
            continue
        best = bs
    return best


def residual_block_forward(x_nchw, w1s, b1r, w2s, b2r):
    """Fused ResidualBlock forward. x_nchw: (N, Cin, H, W) f32 -> (N, C2, H, W)."""
    N, Cin, H, W = x_nchw.shape
    WCin = W * Cin
    WC1, WC2 = b1r.shape[1], b2r.shape[1]
    C2 = WC2 // W
    K1 = w1s.shape[0] // WCin
    K2 = w2s.shape[0] // WC1
    P1, P2 = (K1 - 1) // 2, (K2 - 1) // 2
    P = max(P1, P2)
    Hs = _round_up(H + 2 * P, 8)          # per-sample row block, sublane aligned
    BS = _choose_batch_per_step(N, Hs)
    G = N // BS
    M = BS * Hs

    # NCHW -> lane-dense row slabs; embed each sample in an Hs-row block with
    # P zero halo rows above the data, then stack BS samples per grid step.
    x_rows = jnp.transpose(x_nchw, (0, 2, 3, 1)).reshape(N, H, WCin)
    x_blk = jnp.pad(x_rows, ((0, 0), (P, Hs - H - P), (0, 0)))
    x_stk = x_blk.reshape(G, M, WCin)
    # Lane-concat of the K1 row-shifted copies (folds conv1's H taps into one
    # contraction); cast to bf16 for the MXU (layout plumbing, jitted).
    x_halo = jnp.pad(x_stk, ((0, 0), (P1, P1), (0, 0)))
    xcat = jnp.concatenate([x_halo[:, dy:dy + M, :] for dy in range(K1)],
                           axis=2).astype(jnp.bfloat16)

    # 1.0 on data rows, 0.0 on halo/pad rows of each per-sample block.
    rin = jnp.arange(M) % Hs
    mask = ((rin >= P) & (rin < P + H)).astype(jnp.float32).reshape(M, 1)

    flops = 2 * G * M * (w1s.shape[0] * w1s.shape[1] + w2s.shape[0] * WC2)
    bytes_accessed = (xcat.size * 2 + w1s.size * 2 + w2s.size * 2
                      + b1r.size * 4 + b2r.size * 4 + mask.size * 4
                      + G * M * WC2 * 4)

    out_rows = pl.pallas_call(
        _residual_block_kernel,
        out_shape=jax.ShapeDtypeStruct((G, M, WC2), x_nchw.dtype),
        grid_spec=pltpu.PrefetchScalarGridSpec(
            num_scalar_prefetch=0,
            grid=(G,),
            in_specs=[
                pl.BlockSpec((1, M, K1 * WCin), lambda g: (g, 0, 0)),
                pl.BlockSpec((K1 * WCin, WC1 + WC2), lambda g: (0, 0)),
                pl.BlockSpec((1, WC1), lambda g: (0, 0)),
                pl.BlockSpec((K2 * WC1, WC2), lambda g: (0, 0)),
                pl.BlockSpec((1, WC2), lambda g: (0, 0)),
                pl.BlockSpec((M, 1), lambda g: (0, 0)),
            ],
            out_specs=pl.BlockSpec((1, M, WC2), lambda g: (g, 0, 0)),
        ),
        compiler_params=pltpu.CompilerParams(
            dimension_semantics=("parallel",)),
        cost_estimate=pl.CostEstimate(flops=flops, transcendentals=0,
                                      bytes_accessed=bytes_accessed),
    )(xcat, w1s, b1r, w2s, b2r, mask)

    out = out_rows.reshape(N, Hs, W, C2)[:, P:P + H]           # strip halo rows
    return jnp.transpose(out, (0, 3, 1, 2))                    # NHWC -> NCHW


def residual_block_reference(x_nchw, w1, b1, w2, b2, wsc):
    """Plain-JAX reference (same semantics as the PyTorch module)."""
    x = jnp.transpose(x_nchw, (0, 2, 3, 1))
    dn = ('NHWC', 'HWIO', 'NHWC')
    y = jax.lax.conv_general_dilated(x, w1, (1, 1), 'SAME',
                                     dimension_numbers=dn) + b1.reshape(1, 1, 1, -1)
    y = jnp.maximum(y, 0.0)
    y = jax.lax.conv_general_dilated(y, w2, (1, 1), 'SAME',
                                     dimension_numbers=dn) + b2.reshape(1, 1, 1, -1)
    sc = jnp.einsum('nhwc,cd->nhwd', x, wsc)
    out = jnp.maximum(y + sc, 0.0)
    return jnp.transpose(out, (0, 3, 1, 2))


if __name__ == "__main__":
    # ResidualBlock(in_channels=4, channels=[8, 8], kernel_sizes=[3, 3])
    N, Cin, H, W = 2, 4, 16, 16
    C1, C2 = 8, 8
    K1 = K2 = 3

    key = jax.random.PRNGKey(0)
    k_x, k_w1, k_b1, k_w2, k_b2, k_sc = jax.random.split(key, 6)

    x = jax.random.normal(k_x, (N, Cin, H, W), dtype=jnp.float32)
    w1 = 0.1 * jax.random.normal(k_w1, (K1, K1, Cin, C1), dtype=jnp.float32)
    b1 = 0.1 * jax.random.normal(k_b1, (C1,), dtype=jnp.float32)
    w2 = 0.1 * jax.random.normal(k_w2, (K2, K2, C1, C2), dtype=jnp.float32)
    b2 = 0.1 * jax.random.normal(k_b2, (C2,), dtype=jnp.float32)
    wsc = 0.1 * jax.random.normal(k_sc, (Cin, C2), dtype=jnp.float32)

    # Weight banding/stacking/bf16 packing happens once, outside the call path.
    w1s, b1r, w2s, b2r = pack_residual_block_params(w1, b1, w2, b2, wsc, W)
    fwd = jax.jit(residual_block_forward)

    out = jax.block_until_ready(fwd(x, w1s, b1r, w2s, b2r))
    ref = jax.block_until_ready(residual_block_reference(x, w1, b1, w2, b2, wsc))

    assert out.shape == (N, C2, H, W)
    # bf16 MXU operands with f32 accumulation -> slightly relaxed tolerance.
    assert jnp.allclose(out, ref, rtol=2e-2, atol=2e-2), "mismatch vs reference"

    print("KERNEL_OK")
</pallas_src>

<mosaic_0001>
module attributes {stable_mosaic.version = 11 : i64} {
  func.func @_residual_block_kernel(%arg0: i32, %arg1: memref<1x24x192xbf16, #tpu.memory_space<vmem>>, %arg2: memref<192x256xbf16, #tpu.memory_space<vmem>>, %arg3: memref<1x128xf32, #tpu.memory_space<vmem>>, %arg4: memref<384x128xbf16, #tpu.memory_space<vmem>>, %arg5: memref<1x128xf32, #tpu.memory_space<vmem>>, %arg6: memref<24x1xf32, #tpu.memory_space<vmem>>, %arg7: memref<1x24x128xf32, #tpu.memory_space<vmem>>) attributes {dimension_semantics = [#tpu.dimension_semantics<parallel>], iteration_bounds = array<i64: 2>, scalar_prefetch = 0 : i64, scratch_operands = 0 : i64, tpu.core_type = #tpu.core_type<tc>, window_params = [{transform_indices = @transform_0, window_bounds = array<i64: 1, 24, 192>}, {pipeline_mode = #tpu.pipeline_mode<synchronous>, transform_indices = @transform_1, window_bounds = array<i64: 192, 256>}, {pipeline_mode = #tpu.pipeline_mode<synchronous>, transform_indices = @transform_2, window_bounds = array<i64: 1, 128>}, {pipeline_mode = #tpu.pipeline_mode<synchronous>, transform_indices = @transform_3, window_bounds = array<i64: 384, 128>}, {pipeline_mode = #tpu.pipeline_mode<synchronous>, transform_indices = @transform_4, window_bounds = array<i64: 1, 128>}, {pipeline_mode = #tpu.pipeline_mode<synchronous>, transform_indices = @transform_5, window_bounds = array<i64: 24, 1>}, {transform_indices = @transform_6, window_bounds = array<i64: 1, 24, 128>}]} {
    %c0 = arith.constant 0 : index
    %c0_0 = arith.constant 0 : index
    %c0_1 = arith.constant 0 : index
    %0 = vector.load %arg1[%c0, %c0_0, %c0_1] : memref<1x24x192xbf16, #tpu.memory_space<vmem>>, vector<1x24x192xbf16>
    %1 = vector.shape_cast %0 : vector<1x24x192xbf16> to vector<24x192xbf16>
    %c0_2 = arith.constant 0 : index
    %c0_3 = arith.constant 0 : index
    %2 = vector.load %arg2[%c0_2, %c0_3] : memref<192x256xbf16, #tpu.memory_space<vmem>>, vector<192x256xbf16>
    %cst = arith.constant dense<0.000000e+00> : vector<24x256xf32>
    %3 = tpu.matmul %1, %2, %cst {dimension_numbers = #tpu.dot_dimension_numbers<[1], [0], [0], [1], [0, 0, 1, 1], [], []>} : vector<24x192xbf16>, vector<192x256xbf16>, vector<24x256xf32> -> vector<24x256xf32>
    %4 = vector.extract_strided_slice %3 {offsets = [0, 0], sizes = [24, 128], strides = [1, 1]} : vector<24x256xf32> to vector<24x128xf32>
    %c0_4 = arith.constant 0 : index
    %c0_5 = arith.constant 0 : index
    %5 = vector.load %arg3[%c0_4, %c0_5] : memref<1x128xf32, #tpu.memory_space<vmem>>, vector<1x128xf32>
    %6 = vector.broadcast %5 : vector<1x128xf32> to vector<24x128xf32>
    %7 = arith.addf %4, %6 : vector<24x128xf32>
    %cst_6 = arith.constant 0.000000e+00 : f32
    %8 = vector.broadcast %cst_6 : f32 to vector<24x128xf32>
    %9 = arith.maximumf %7, %8 : vector<24x128xf32>
    %c0_7 = arith.constant 0 : index
    %c0_8 = arith.constant 0 : index
    %10 = vector.load %arg6[%c0_7, %c0_8] : memref<24x1xf32, #tpu.memory_space<vmem>>, vector<24x1xf32>
    %11 = vector.broadcast %10 : vector<24x1xf32> to vector<24x128xf32>
    %12 = arith.mulf %9, %11 : vector<24x128xf32>
    %13 = vector.extract_strided_slice %3 {offsets = [0, 128], sizes = [24, 128], strides = [1, 1]} : vector<24x256xf32> to vector<24x128xf32>
    %c1_i32 = arith.constant 1 : i32
    %14 = tpu.dynamic_rotate %12 by %c1_i32 dim 0 : vector<24x128xf32>, i32 -> vector<24x128xf32>
    %c23_i32 = arith.constant 23 : i32
    %15 = tpu.dynamic_rotate %12 by %c23_i32 dim 0 : vector<24x128xf32>, i32 -> vector<24x128xf32>
    %16 = tpu.concatenate %14, %12, %15 in 1 : vector<24x128xf32>, vector<24x128xf32>, vector<24x128xf32> -> vector<24x384xf32>
    %17 = arith.truncf %16 : vector<24x384xf32> to vector<24x384xbf16>
    %c0_9 = arith.constant 0 : index
    %c0_10 = arith.constant 0 : index
    %18 = vector.load %arg4[%c0_9, %c0_10] : memref<384x128xbf16, #tpu.memory_space<vmem>>, vector<384x128xbf16>
    %cst_11 = arith.constant dense<0.000000e+00> : vector<24x128xf32>
    %19 = tpu.matmul %17, %18, %cst_11 {dimension_numbers = #tpu.dot_dimension_numbers<[1], [0], [0], [1], [0, 0, 1, 1], [], []>} : vector<24x384xbf16>, vector<384x128xbf16>, vector<24x128xf32> -> vector<24x128xf32>
    %20 = arith.addf %19, %13 : vector<24x128xf32>
    %c0_12 = arith.constant 0 : index
    %c0_13 = arith.constant 0 : index
    %21 = vector.load %arg5[%c0_12, %c0_13] : memref<1x128xf32, #tpu.memory_space<vmem>>, vector<1x128xf32>
    %22 = vector.broadcast %21 : vector<1x128xf32> to vector<24x128xf32>
    %23 = arith.addf %20, %22 : vector<24x128xf32>
    %cst_14 = arith.constant 0.000000e+00 : f32
    %24 = vector.broadcast %cst_14 : f32 to vector<24x128xf32>
    %25 = arith.maximumf %23, %24 : vector<24x128xf32>
    %c0_15 = arith.constant 0 : index
    %c0_16 = arith.constant 0 : index
    %c0_17 = arith.constant 0 : index
    %26 = vector.load %arg7[%c0_15, %c0_16, %c0_17] : memref<1x24x128xf32, #tpu.memory_space<vmem>>, vector<1x24x128xf32>
    %27 = vector.shape_cast %26 : vector<1x24x128xf32> to vector<24x128xf32>
    %28 = vector.shape_cast %25 : vector<24x128xf32> to vector<1x24x128xf32>
    tpu.vector_store %arg7[%c0_15, %c0_16, %c0_17], %28 {strides = array<i32>} : memref<1x24x128xf32, #tpu.memory_space<vmem>>, vector<1x24x128xf32>,
    return
  }
  func.func @transform_0(%arg0: i32) -> (i32, i32, i32) {
    %c0_i32 = arith.constant 0 : i32
    %c0_i32_0 = arith.constant 0 : i32
    %c0_i32_1 = arith.constant 0 : i32
    return %arg0, %c0_i32, %c0_i32_0 : i32, i32, i32
  }
  func.func @transform_1(%arg0: i32) -> (i32, i32) {
    %c0_i32 = arith.constant 0 : i32
    %c0_i32_0 = arith.constant 0 : i32
    %c0_i32_1 = arith.constant 0 : i32
    return %c0_i32, %c0_i32_0 : i32, i32
  }
  func.func @transform_2(%arg0: i32) -> (i32, i32) {
    %c0_i32 = arith.constant 0 : i32
    %c0_i32_0 = arith.constant 0 : i32
    %c0_i32_1 = arith.constant 0 : i32
    return %c0_i32, %c0_i32_0 : i32, i32
  }
  func.func @transform_3(%arg0: i32) -> (i32, i32) {
    %c0_i32 = arith.constant 0 : i32
    %c0_i32_0 = arith.constant 0 : i32
    %c0_i32_1 = arith.constant 0 : i32
    return %c0_i32, %c0_i32_0 : i32, i32
  }
  func.func @transform_4(%arg0: i32) -> (i32, i32) {
    %c0_i32 = arith.constant 0 : i32
    %c0_i32_0 = arith.constant 0 : i32
    %c0_i32_1 = arith.constant 0 : i32
    return %c0_i32, %c0_i32_0 : i32, i32
  }
  func.func @transform_5(%arg0: i32) -> (i32, i32) {
    %c0_i32 = arith.constant 0 : i32
    %c0_i32_0 = arith.constant 0 : i32
    %c0_i32_1 = arith.constant 0 : i32
    return %c0_i32, %c0_i32_0 : i32, i32
  }
  func.func @transform_6(%arg0: i32) -> (i32, i32, i32) {
    %c0_i32 = arith.constant 0 : i32
    %c0_i32_0 = arith.constant 0 : i32
    %c0_i32_1 = arith.constant 0 : i32
    return %arg0, %c0_i32, %c0_i32_0 : i32, i32, i32
  }
}

</mosaic_0001>

<llo_original>
// kernel: residual_block_forward.1
$region0: #{residual_block_forward.1}
  #allocation0 [shape = 'u32[]', space=smem, size = 0x4, offset = 0x4, fixed_abs, tag = 'smem constant byte address 0x4 - core index']
  #allocation1 [shape = 'u32[72,128]{1,0:T(1,128)}', space=vmem, size = 0x9000, scoped, tag = 'internal scratch']
  %s0 = inlined_call_operand.vmem [shape: bf16[2,24,192], index: 0, kind: input, shape index: {}]
  %s1 = inlined_call_operand.vmem [shape: bf16[192,256], index: 1, kind: input, shape index: {}]
  %s2 = inlined_call_operand.vmem [shape: f32[1,128], index: 2, kind: input, shape index: {}]
  %s3 = inlined_call_operand.vmem [shape: bf16[384,128], index: 3, kind: input, shape index: {}]
  %s4 = inlined_call_operand.vmem [shape: f32[1,128], index: 4, kind: input, shape index: {}]
  %s5 = inlined_call_operand.vmem [shape: f32[24,1], index: 5, kind: input, shape index: {}]
  %s6 = inlined_call_operand.vmem [shape: f32[2,24,128], index: 6, kind: output, shape index: {}]
  %s7 = sld [smem:[#allocation0]]
  $region57: #{residual_block_forward.1} parent=0
    _
  %s9 = ssub.s32 1, %s7
  %s10 = scalar_select 0, %s9, %s7
  loop: start=0, step=1, limit=4
  $region2: #{residual_block_forward.1} parent=0 // loop_pre_header
    _
  $region3: #{residual_block_forward.1} parent=0 // loop_header
    %s12 = sphi 0, %s16
    %p13 = scmp.ge.s32.totalorder %s12, 4
    %s22 = sphi 0, %s24
    %s25 = sphi 0, %s22
    %s26 = sphi 0, %s25
    %s42 = sphi 0, %s26
    %s46 = sphi 0, %s46
    %s48 = sphi 0, %s46
    %s49 = sphi 0, %s48
    %s63 = sphi 0, %s49
    %s67 = sphi 0, %s67
    %s69 = sphi 0, %s67
    %s70 = sphi 0, %s69
    %s84 = sphi 0, %s70
    %s88 = sphi 0, %s88
    %s90 = sphi 0, %s88
    %s91 = sphi 0, %s90
    %s105 = sphi 0, %s91
    %s109 = sphi 0, %s109
    %s111 = sphi 0, %s109
    %s112 = sphi 0, %s111
    %s126 = sphi 0, %s112
    %s130 = sphi 0, %s130
    %s132 = sphi 0, %s130
    %s133 = sphi 0, %s132
    %s147 = sphi 0, %s133
    %s153 = sphi 0, %s155
    %s156 = sphi 0, %s153
    %s157 = sphi 0, %s156
    %s173 = sphi 0, %s157
  $region4: #{residual_block_forward.1} parent=0 // loop_header_branch
    %15 = sbr.rel (%p13) target = $region8
  $region5: #{residual_block_forward.1} parent=0 // loop_body
    %s17 = ssub.s32 %s12, 1
    %s18 = ssub.s32 %s12, 2
    %s19 = sadd.s32 %s12, 1
    %s20 = ssub.s32 %s12, %s19
    %p21 = scmp.eq.s32.totalorder %s20, 0
    %s23 = sadd.s32 %s22, 1
    %s24 = scalar_select %p21, %s22, %s23
    %p27 = pneg %p21
    %p28 = scmp.eq.s32.totalorder %s12, 1
    %p29 = por %p27, %p28
    %p30 = scmp.ne.s32.totalorder %s22, %s25
    %p31 = scmp.eq.s32.totalorder %s12, 0
    %p32 = por %p30, %p31
    %p33 = scmp.ne.s32.totalorder %s22, %s25
    %p34 = scmp.eq.s32.totalorder %s17, 1
    %p35 = por %p33, %p34
    %p36 = scmp.ne.s32.totalorder %s25, %s26
    %p37 = scmp.eq.s32.totalorder %s17, 0
    %p38 = por %p36, %p37
    %p39 = scmp.ne.s32.totalorder %s25, %s26
    %p40 = scmp.eq.s32.totalorder %s18, 1
    %p41 = por %p39, %p40
    %p43 = scmp.ne.s32.totalorder %s26, %s42
    %p44 = scmp.eq.s32.totalorder %s18, 0
    %p45 = por %p43, %p44
    %s47 = sadd.s32 %s46, 1
    %p50 = scmp.eq.s32.totalorder %s12, 1
    %p51 = scmp.ne.s32.totalorder %s46, %s48
    %p52 = scmp.eq.s32.totalorder %s12, 0
    %p53 = por %p51, %p52
    %p54 = scmp.ne.s32.totalorder %s46, %s48
    %p55 = scmp.eq.s32.totalorder %s17, 1
    %p56 = por %p54, %p55
    %p57 = scmp.ne.s32.totalorder %s48, %s49
    %p58 = scmp.eq.s32.totalorder %s17, 0
    %p59 = por %p57, %p58
    %p60 = scmp.ne.s32.totalorder %s48, %s49
    %p61 = scmp.eq.s32.totalorder %s18, 1
    %p62 = por %p60, %p61
    %p64 = scmp.ne.s32.totalorder %s49, %s63
    %p65 = scmp.eq.s32.totalorder %s18, 0
    %p66 = por %p64, %p65
    %s68 = sadd.s32 %s67, 1
    %p71 = scmp.eq.s32.totalorder %s12, 1
    %p72 = scmp.ne.s32.totalorder %s67, %s69
    %p73 = scmp.eq.s32.totalorder %s12, 0
    %p74 = por %p72, %p73
    %p75 = scmp.ne.s32.totalorder %s67, %s69
    %p76 = scmp.eq.s32.totalorder %s17, 1
    %p77 = por %p75, %p76
    %p78 = scmp.ne.s32.totalorder %s69, %s70
    %p79 = scmp.eq.s32.totalorder %s17, 0
    %p80 = por %p78, %p79
    %p81 = scmp.ne.s32.totalorder %s69, %s70
    %p82 = scmp.eq.s32.totalorder %s18, 1
    %p83 = por %p81, %p82
    %p85 = scmp.ne.s32.totalorder %s70, %s84
    %p86 = scmp.eq.s32.totalorder %s18, 0
    %p87 = por %p85, %p86
    %s89 = sadd.s32 %s88, 1
    %p92 = scmp.eq.s32.totalorder %s12, 1
    %p93 = scmp.ne.s32.totalorder %s88, %s90
    %p94 = scmp.eq.s32.totalorder %s12, 0
    %p95 = por %p93, %p94
    %p96 = scmp.ne.s32.totalorder %s88, %s90
    %p97 = scmp.eq.s32.totalorder %s17, 1
    %p98 = por %p96, %p97
    %p99 = scmp.ne.s32.totalorder %s90, %s91
    %p100 = scmp.eq.s32.totalorder %s17, 0
    %p101 = por %p99, %p100
    %p102 = scmp.ne.s32.totalorder %s90, %s91
    %p103 = scmp.eq.s32.totalorder %s18, 1
    %p104 = por %p102, %p103
    %p106 = scmp.ne.s32.totalorder %s91, %s105
    %p107 = scmp.eq.s32.totalorder %s18, 0
    %p108 = por %p106, %p107
    %s110 = sadd.s32 %s109, 1
    %p113 = scmp.eq.s32.totalorder %s12, 1
    %p114 = scmp.ne.s32.totalorder %s109, %s111
    %p115 = scmp.eq.s32.totalorder %s12, 0
    %p116 = por %p114, %p115
    %p117 = scmp.ne.s32.totalorder %s109, %s111
    %p118 = scmp.eq.s32.totalorder %s17, 1
    %p119 = por %p117, %p118
    %p120 = scmp.ne.s32.totalorder %s111, %s112
    %p121 = scmp.eq.s32.totalorder %s17, 0
    %p122 = por %p120, %p121
    %p123 = scmp.ne.s32.totalorder %s111, %s112
    %p124 = scmp.eq.s32.totalorder %s18, 1
    %p125 = por %p123, %p124
    %p127 = scmp.ne.s32.totalorder %s112, %s126
    %p128 = scmp.eq.s32.totalorder %s18, 0
    %p129 = por %p127, %p128
    %s131 = sadd.s32 %s130, 1
    %p134 = scmp.eq.s32.totalorder %s12, 1
    %p135 = scmp.ne.s32.totalorder %s130, %s132
    %p136 = scmp.eq.s32.totalorder %s12, 0
    %p137 = por %p135, %p136
    %p138 = scmp.ne.s32.totalorder %s130, %s132
    %p139 = scmp.eq.s32.totalorder %s17, 1
    %p140 = por %p138, %p139
    %p141 = scmp.ne.s32.totalorder %s132, %s133
    %p142 = scmp.eq.s32.totalorder %s17, 0
    %p143 = por %p141, %p142
    %p144 = scmp.ne.s32.totalorder %s132, %s133
    %p145 = scmp.eq.s32.totalorder %s18, 1
    %p146 = por %p144, %p145
    %p148 = scmp.ne.s32.totalorder %s133, %s147
    %p149 = scmp.eq.s32.totalorder %s18, 0
    %p150 = por %p148, %p149
    %s151 = ssub.s32 %s12, %s19
    %p152 = scmp.eq.s32.totalorder %s151, 0
    %s154 = sadd.s32 %s153, 1
    %s155 = scalar_select %p152, %s153, %s154
    %p158 = pneg %p152
    %p159 = scmp.eq.s32.totalorder %s12, 1
    %p160 = por %p158, %p159
    %p161 = scmp.ne.s32.totalorder %s153, %s156
    %p162 = scmp.eq.s32.totalorder %s12, 0
    %p163 = por %p161, %p162
    %p164 = scmp.ne.s32.totalorder %s153, %s156
    %p165 = scmp.eq.s32.totalorder %s17, 1
    %p166 = por %p164, %p165
    %p167 = scmp.ne.s32.totalorder %s156, %s157
    %p168 = scmp.eq.s32.totalorder %s17, 0
    %p169 = por %p167, %p168
    %p170 = scmp.ne.s32.totalorder %s156, %s157
    %p171 = scmp.eq.s32.totalorder %s18, 1
    %p172 = por %p170, %p171
    %p174 = scmp.ne.s32.totalorder %s157, %s173
    %p175 = scmp.eq.s32.totalorder %s18, 0
    %p176 = por %p174, %p175
    %p177 = scmp.le.s32.totalorder 1, %s12
    %p178 = scmp.lt.s32.totalorder %s12, 3
    %p179 = pnand %p177, %p178
    %p180 = pneg %p179
    // Predicated region
    $region9: #{residual_block_forward.1} parent=5 // pred_check
      _
    $region10: #{residual_block_forward.1} parent=5 // pred_check_branch
      %182 = sbr.rel (%p179) target = $region12
    $region11: #{residual_block_forward.1} parent=5 // pred_region
      %s183 = ssub.s32 %s12, 1
      // Predicated region
      $region13: #{residual_block_forward.1} parent=11 // pred_check
        %p184 = pneg %p59
      $region14: #{residual_block_forward.1} parent=11 // pred_check_branch
        %186 = sbr.rel (%p184) target = $region16
      $region15: #{residual_block_forward.1} parent=11 // pred_region
        _
      $region16: #{residual_block_forward.1} parent=11 // pred_fallthru
        _
      // Predicated region
      $region17: #{residual_block_forward.1} parent=11 // pred_check
        %p187 = pneg %p80
      $region18: #{residual_block_forward.1} parent=11 // pred_check_branch
        %189 = sbr.rel (%p187) target = $region20
      $region19: #{residual_block_forward.1} parent=11 // pred_region
        _
      $region20: #{residual_block_forward.1} parent=11 // pred_fallthru
        _
      // Predicated region
      $region21: #{residual_block_forward.1} parent=11 // pred_check
        %p190 = pneg %p101
      $region22: #{residual_block_forward.1} parent=11 // pred_check_branch
        %192 = sbr.rel (%p190) target = $region24
      $region23: #{residual_block_forward.1} parent=11 // pred_region
        _
      $region24: #{residual_block_forward.1} parent=11 // pred_fallthru
        _
      // Predicated region
      $region25: #{residual_block_forward.1} parent=11 // pred_check
        %p193 = pneg %p122
      $region26: #{residual_block_forward.1} parent=11 // pred_check_branch
        %195 = sbr.rel (%p193) target = $region28
      $region27: #{residual_block_forward.1} parent=11 // pred_region
        _
      $region28: #{residual_block_forward.1} parent=11 // pred_fallthru
        _
      // Predicated region
      $region29: #{residual_block_forward.1} parent=11 // pred_check
        %p196 = pneg %p143
      $region30: #{residual_block_forward.1} parent=11 // pred_check_branch
        %198 = sbr.rel (%p196) target = $region32
      $region31: #{residual_block_forward.1} parent=11 // pred_region
        _
      $region32: #{residual_block_forward.1} parent=11 // pred_fallthru
        _
    $region12: #{residual_block_forward.1} parent=5 // pred_fallthru
      _
    %p199 = scmp.lt.s32.totalorder %s12, 2
    // Predicated region
    $region33: #{residual_block_forward.1} parent=5 // pred_check
      %p200 = pneg %p199
    $region34: #{residual_block_forward.1} parent=5 // pred_check_branch
      %202 = sbr.rel (%p200) target = $region36
    $region35: #{residual_block_forward.1} parent=5 // pred_region
      // Predicated region
      $region37: #{residual_block_forward.1} parent=35 // pred_check
        %p203 = pneg %p32
      $region38: #{residual_block_forward.1} parent=35 // pred_check_branch
        %205 = sbr.rel (%p203) target = $region40
      $region39: #{residual_block_forward.1} parent=35 // pred_region
        %p206 = scmp.lt.s32.totalorder %s12, 1
        %s207 = scalar_select %p206, %s12, 1
        %s208 = smul.addr %s207, 6
        %s209 = smul.addr %s208, 4
        %s210 = scalar_lea.vmem %s0, %s209
      $region40: #{residual_block_forward.1} parent=35 // pred_fallthru
        _
    $region36: #{residual_block_forward.1} parent=5 // pred_fallthru
      _
    %p211 = scmp.le.s32.totalorder 1, %s12
    %p212 = scmp.lt.s32.totalorder %s12, 3
    %p213 = pnand %p211, %p212
    %p214 = pneg %p213
    // Predicated region
    $region41: #{residual_block_forward.1} parent=5 // pred_check
      _
    $region42: #{residual_block_forward.1} parent=5 // pred_check_branch
      %216 = sbr.rel (%p213) target = $region44
    $region43: #{residual_block_forward.1} parent=5 // pred_region
      %s217 = ssub.s32 %s12, 1
      %p218 = scmp.lt.s32.totalorder %s17, 1
      %s219 = scalar_select %p218, %s17, 1
      %s220 = smul.addr %s219, 6
      %s221 = smul.addr %s220, 4
      %s222 = scalar_lea.vmem %s0, %s221
      %p223 = pneg %p38
      %p224 = pneg %p35
      %p225 = pneg %p59
      %p226 = pneg %p56
      %p227 = pneg %p80
      %p228 = pneg %p77
      %p229 = pneg %p101
      %p230 = pneg %p98
      %p231 = pneg %p122
      %p232 = pneg %p119
      %p233 = pneg %p143
      %p234 = pneg %p140
      %p235 = pneg %p169
      %p236 = pneg %p166
      %p237 = scmp.lt.s32.totalorder %s17, 1
      %s238 = scalar_select %p237, %s17, 1
      %s239 = smul.addr %s238, 3
      %s240 = smul.addr %s239, 8
      %s241 = scalar_lea.vmem %s6, %s240
      %p242 = scmp.lt.s32.totalorder %s17, 1
      %s243 = scalar_select %p242, %s17, 1
      %s244 = smul.addr %s243, 6
      %s245 = smul.addr %s244, 4
      %s246 = scalar_lea.vmem %s0, %s245
      %p247 = scmp.lt.s32.totalorder %s17, 1
      %s248 = scalar_select %p247, %s17, 1
      %s249 = smul.addr %s248, 3
      %s250 = smul.addr %s249, 8
      %s251 = scalar_lea.vmem %s6, %s250
      %v253 = vld [vmem:[%s246] sm:$0xff]
      %v254 = vld [vmem:[%s246 + $0x8] sm:$0xff]
      %v255 = vld [vmem:[%s246 + $0x10] sm:$0xff]
      %v256 = vld [vmem:[%s1] sm:$0xff]
      %v257 = vld [vmem:[%s1 + $0x8] sm:$0xff]
      %v258 = vld [vmem:[%s1 + $0x10] sm:$0xff]
      %v259 = vld [vmem:[%s1 + $0x18] sm:$0xff]
      %v260 = vld [vmem:[%s1 + $0x20] sm:$0xff]
      %v261 = vld [vmem:[%s1 + $0x28] sm:$0xff]
      %v262 = vld [vmem:[%s1 + $0x30] sm:$0xff]
      %v263 = vld [vmem:[%s1 + $0x38] sm:$0xff]
      %v264 = vld [vmem:[%s1 + $0x40] sm:$0xff]
      %v265 = vld [vmem:[%s1 + $0x48] sm:$0xff]
      %v266 = vld [vmem:[%s1 + $0x50] sm:$0xff]
      %v267 = vld [vmem:[%s1 + $0x58] sm:$0xff]
      %v268 = vld [vmem:[%s1 + $0x60] sm:$0xff]
      %v269 = vld [vmem:[%s1 + $0x68] sm:$0xff]
      %v270 = vld [vmem:[%s1 + $0x70] sm:$0xff]
      %v271 = vld [vmem:[%s1 + $0x78] sm:$0xff]
      %v272 = vld [vmem:[%s1 + $0x80] sm:$0xff]
      %v273 = vld [vmem:[%s1 + $0x88] sm:$0xff]
      %v274 = vld [vmem:[%s1 + $0x90] sm:$0xff]
      %v275 = vld [vmem:[%s1 + $0x98] sm:$0xff]
      %v276 = vld [vmem:[%s1 + $0xa0] sm:$0xff]
      %v277 = vld [vmem:[%s1 + $0xa8] sm:$0xff]
      %v278 = vld [vmem:[%s1 + $0xb0] sm:$0xff]
      %v279 = vld [vmem:[%s1 + $0xb8] sm:$0xff]
      %v283 = vunpack.c.l.b16 %v253
      %v284 = vunpack.c.h.b16 %v253
      %v285 = vunpack.c.l.b16 %v254
      %v286 = vunpack.c.h.b16 %v254
      %v287 = vunpack.c.l.b16 %v255
      %v288 = vunpack.c.h.b16 %v255
      %v289 = vpack.c.b16 %v285, %v283
      %v290 = vpack.c.b16 %v286, %v284
      %v291 = vpack.c.b16 %v287, %v287
      %v292 = vpack.c.b16 %v288, %v288
      %v319 = vunpack.c.l.b16 %v256
      %v320 = vunpack.c.h.b16 %v256
      %v321 = vunpack.c.l.b16 %v257
      %v322 = vunpack.c.h.b16 %v257
      %v323 = vunpack.c.l.b16 %v258
      %v324 = vunpack.c.h.b16 %v258
      %v325 = vunpack.c.l.b16 %v259
      %v326 = vunpack.c.h.b16 %v259
      %v327 = vunpack.c.l.b16 %v260
      %v328 = vunpack.c.h.b16 %v260
      %v329 = vunpack.c.l.b16 %v261
      %v330 = vunpack.c.h.b16 %v261
      %v331 = vunpack.c.l.b16 %v262
      %v332 = vunpack.c.h.b16 %v262
      %v333 = vunpack.c.l.b16 %v263
      %v334 = vunpack.c.h.b16 %v263
      %v335 = vunpack.c.l.b16 %v264
      %v336 = vunpack.c.h.b16 %v264
      %v337 = vunpack.c.l.b16 %v265
      %v338 = vunpack.c.h.b16 %v265
      %v339 = vunpack.c.l.b16 %v266
      %v340 = vunpack.c.h.b16 %v266
      %v341 = vunpack.c.l.b16 %v267
      %v342 = vunpack.c.h.b16 %v267
      %v343 = vunpack.c.l.b16 %v268
      %v344 = vunpack.c.h.b16 %v268
      %v345 = vunpack.c.l.b16 %v269
      %v346 = vunpack.c.h.b16 %v269
      %v347 = vunpack.c.l.b16 %v270
      %v348 = vunpack.c.h.b16 %v270
      %v349 = vunpack.c.l.b16 %v271
      %v350 = vunpack.c.h.b16 %v271
      %v351 = vunpack.c.l.b16 %v272
      %v352 = vunpack.c.h.b16 %v272
      %v353 = vunpack.c.l.b16 %v273
      %v354 = vunpack.c.h.b16 %v273
      %v355 = vunpack.c.l.b16 %v274
      %v356 = vunpack.c.h.b16 %v274
      %v357 = vunpack.c.l.b16 %v275
      %v358 = vunpack.c.h.b16 %v275
      %v359 = vunpack.c.l.b16 %v276
      %v360 = vunpack.c.h.b16 %v276
      %v361 = vunpack.c.l.b16 %v277
      %v362 = vunpack.c.h.b16 %v277
      %v363 = vunpack.c.l.b16 %v278
      %v364 = vunpack.c.h.b16 %v278
      %v365 = vunpack.c.l.b16 %v279
      %v366 = vunpack.c.h.b16 %v279
      %v367 = vpack.c.b16 %v321, %v319
      %v368 = vpack.c.b16 %v322, %v320
      %v369 = vpack.c.b16 %v325, %v323
      %v370 = vpack.c.b16 %v326, %v324
      %v371 = vpack.c.b16 %v329, %v327
      %v372 = vpack.c.b16 %v330, %v328
      %v373 = vpack.c.b16 %v333, %v331
      %v374 = vpack.c.b16 %v334, %v332
      %v375 = vpack.c.b16 %v337, %v335
      %v376 = vpack.c.b16 %v338, %v336
      %v377 = vpack.c.b16 %v341, %v339
      %v378 = vpack.c.b16 %v342, %v340
      %v379 = vpack.c.b16 %v345, %v343
      %v380 = vpack.c.b16 %v346, %v344
      %v381 = vpack.c.b16 %v349, %v347
      %v382 = vpack.c.b16 %v350, %v348
      %v383 = vpack.c.b16 %v353, %v351
      %v384 = vpack.c.b16 %v354, %v352
      %v385 = vpack.c.b16 %v357, %v355
      %v386 = vpack.c.b16 %v358, %v356
      %v387 = vpack.c.b16 %v361, %v359
      %v388 = vpack.c.b16 %v362, %v360
      %v389 = vpack.c.b16 %v365, %v363
      %v390 = vpack.c.b16 %v366, %v364
      %vm415 = vcmask 523264
      %v417 = vsel %vm415, %v290, 0
      %v420 = vsel %vm415, %v292, 0
      %422 = vmatpush.bf16.msra.mxu0 %v381
      %423 = vmatpush.bf16.msra.mxu0 %v379
      %424 = vmatpush.bf16.msra.mxu0 %v377
      %425 = vmatpush.bf16.msra.mxu0 %v375
      %426 = vmatpush.bf16.msra.mxu0 %v373
      %427 = vmatpush.bf16.msra.mxu0 %v371
      %428 = vmatpush.bf16.msra.mxu0 %v369
      %429 = vmatpush.bf16.msra.mxu0 %v367
      %430 = vmatmul.bf16.gmra.mxu0 %v289
      %v431 = vpop.f32.mrf.mxu0
      %v432 = vadd.f32 0.0, %v431
      %v433 = vpop.f32.mrf.mxu0
      %v434 = vadd.f32 0.0, %v433
      %435 = vmatmul.bf16.gmra.mxu0 %v291
      %v436 = vpop.f32.mrf.mxu0
      %v437 = vadd.f32 0.0, %v436
      %v438 = vpop.f32.mrf.mxu0
      %439 = vdwg.mxu0
      %440 = vmatpush.bf16.msra.mxu0 0
      %441 = vmatpush.bf16.msra.mxu0 0
      %442 = vmatpush.bf16.msra.mxu0 0
      %443 = vmatpush.bf16.msra.mxu0 0
      %444 = vmatpush.bf16.msra.mxu0 %v389
      %445 = vmatpush.bf16.msra.mxu0 %v387
      %446 = vmatpush.bf16.msra.mxu0 %v385
      %447 = vmatpush.bf16.msra.mxu0 %v383
      %448 = vmatmul.bf16.gmra.mxu0 %v417
      %v449 = vpop.f32.mrf.mxu0
      %v450 = vadd.f32 %v432, %v449
      %v451 = vpop.f32.mrf.mxu0
      %v452 = vadd.f32 %v434, %v451
      %453 = vmatmul.bf16.gmra.mxu0 %v420
      %v454 = vpop.f32.mrf.mxu0
      %v455 = vadd.f32 %v437, %v454
      %v456 = vpop.f32.mrf.mxu0
      %457 = vdwg.mxu0
      %458 = vmatpush.bf16.msra.mxu0 %v382
      %459 = vmatpush.bf16.msra.mxu0 %v380
      %460 = vmatpush.bf16.msra.mxu0 %v378
      %461 = vmatpush.bf16.msra.mxu0 %v376
      %462 = vmatpush.bf16.msra.mxu0 %v374
      %463 = vmatpush.bf16.msra.mxu0 %v372
      %464 = vmatpush.bf16.msra.mxu0 %v370
      %465 = vmatpush.bf16.msra.mxu0 %v368
      %466 = vmatmul.bf16.gmra.mxu0 %v289
      %v467 = vpop.f32.mrf.mxu0
      %v468 = vadd.f32 0.0, %v467
      %v469 = vpop.f32.mrf.mxu0
      %v470 = vadd.f32 0.0, %v469
      %471 = vmatmul.bf16.gmra.mxu0 %v291
      %v472 = vpop.f32.mrf.mxu0
      %v473 = vadd.f32 0.0, %v472
      %v474 = vpop.f32.mrf.mxu0
      %475 = vdwg.mxu0
      %476 = vmatpush.bf16.msra.mxu0 0
      %477 = vmatpush.bf16.msra.mxu0 0
      %478 = vmatpush.bf16.msra.mxu0 0
      %479 = vmatpush.bf16.msra.mxu0 0
      %480 = vmatpush.bf16.msra.mxu0 %v390
      %481 = vmatpush.bf16.msra.mxu0 %v388
      %482 = vmatpush.bf16.msra.mxu0 %v386
      %483 = vmatpush.bf16.msra.mxu0 %v384
      %484 = vmatmul.bf16.gmra.mxu0 %v417
      %v485 = vpop.f32.mrf.mxu0
      %v486 = vadd.f32 %v468, %v485
      %v487 = vpop.f32.mrf.mxu0
      %v488 = vadd.f32 %v470, %v487
      %489 = vmatmul.bf16.gmra.mxu0 %v420
      %v490 = vpop.f32.mrf.mxu0
      %v491 = vadd.f32 %v473, %v490
      %v492 = vpop.f32.mrf.mxu0
      %493 = vdwg.mxu0
      %v494 = vld [vmem:[%s2] sm:$0x1]
      %v496 = vperm.slane %v494, 0
      %v498 = vadd.f32 %v450, %v496
      %v499 = vadd.f32 %v452, %v496
      %v500 = vadd.f32 %v455, %v496
      %v501 = vmax.f32 %v498, 0.0
      %v502 = vmax.f32 %v499, 0.0
      %v503 = vmax.f32 %v500, 0.0
      %v504 = vld [vmem:[%s5] sm:$0xff]
      %v505 = vld [vmem:[%s5 + $0x8] sm:$0xff]
      %v506 = vld [vmem:[%s5 + $0x10] sm:$0xff]
      %508 = vset.pattern.permute.xlu0 0
      %509 = vperm.xlu0 %508, %v504
      %v510 = vpop.permute.xlu0 %509
      %513 = vset.pattern.permute.xlu0 0
      %514 = vperm.xlu0 %513, %v505
      %v515 = vpop.permute.xlu0 %514
      %518 = vset.pattern.permute.xlu0 0
      %519 = vperm.xlu0 %518, %v506
      %v520 = vpop.permute.xlu0 %519
      %v522 = vmul.f32 %v501, %v510
      %v523 = vmul.f32 %v502, %v515
      %v524 = vmul.f32 %v503, %v520
      %v525 = vrot.slane %v522, 7
      %v526 = vrot.slane %v523, 7
      %v527 = vrot.slane %v524, 7
      %v528 = vlaneseq
      %v529 = vshrl.u32 %v528, 7
      %vm530 = vcmp.lt.s32.totalorder %v529, 1
      %v531 = vsel %vm530, %v526, %v527
      %v532 = vsel %vm530, %v525, %v526
      %v533 = vsel %vm530, %v527, %v525
      %v534 = vrot.slane %v522, 1
      %v535 = vrot.slane %v523, 1
      %v536 = vrot.slane %v524, 1
      %vm537 = vcmp.lt.s32.totalorder %v529, 7
      %v538 = vsel %vm537, %v535, %v536
      %v539 = vsel %vm537, %v534, %v535
      %v540 = vsel %vm537, %v536, %v534
      %v541 = vpack.c.bf16 %v532, %v533
      %v542 = vpack.c.bf16 %v523, %v522
      %v543 = vpack.c.bf16 %v538, %v539
      %v544 = vpack.c.bf16 %v531, %v531
      %v545 = vpack.c.bf16 %v524, %v524
      %v546 = vpack.c.bf16 %v540, %v540
      %v547 = vld [vmem:[%s3] sm:$0xf]
      %v548 = vld [vmem:[%s3 + $0x4] sm:$0xf]
      %v549 = vld [vmem:[%s3 + $0x8] sm:$0xf]
      %v550 = vld [vmem:[%s3 + $0xc] sm:$0xf]
      %v551 = vld [vmem:[%s3 + $0x10] sm:$0xf]
      %v552 = vld [vmem:[%s3 + $0x14] sm:$0xf]
      %v553 = vld [vmem:[%s3 + $0x18] sm:$0xf]
      %v554 = vld [vmem:[%s3 + $0x1c] sm:$0xf]
      %v555 = vld [vmem:[%s3 + $0x20] sm:$0xf]
      %v556 = vld [vmem:[%s3 + $0x24] sm:$0xf]
      %v557 = vld [vmem:[%s3 + $0x28] sm:$0xf]
      %v558 = vld [vmem:[%s3 + $0x2c] sm:$0xf]
      %v559 = vld [vmem:[%s3 + $0x30] sm:$0xf]
      %v560 = vld [vmem:[%s3 + $0x34] sm:$0xf]
      %v561 = vld [vmem:[%s3 + $0x38] sm:$0xf]
      %v562 = vld [vmem:[%s3 + $0x3c] sm:$0xf]
      %v563 = vld [vmem:[%s3 + $0x40] sm:$0xf]
      %v564 = vld [vmem:[%s3 + $0x44] sm:$0xf]
      %v565 = vld [vmem:[%s3 + $0x48] sm:$0xf]
      %v566 = vld [vmem:[%s3 + $0x4c] sm:$0xf]
      %v567 = vld [vmem:[%s3 + $0x50] sm:$0xf]
      %v568 = vld [vmem:[%s3 + $0x54] sm:$0xf]
      %v569 = vld [vmem:[%s3 + $0x58] sm:$0xf]
      %v570 = vld [vmem:[%s3 + $0x5c] sm:$0xf]
      %v571 = vld [vmem:[%s3 + $0x60] sm:$0xf]
      %v572 = vld [vmem:[%s3 + $0x64] sm:$0xf]
      %v573 = vld [vmem:[%s3 + $0x68] sm:$0xf]
      %v574 = vld [vmem:[%s3 + $0x6c] sm:$0xf]
      %v575 = vld [vmem:[%s3 + $0x70] sm:$0xf]
      %v576 = vld [vmem:[%s3 + $0x74] sm:$0xf]
      %v577 = vld [vmem:[%s3 + $0x78] sm:$0xf]
      %v578 = vld [vmem:[%s3 + $0x7c] sm:$0xf]
      %v579 = vld [vmem:[%s3 + $0x80] sm:$0xf]
      %v580 = vld [vmem:[%s3 + $0x84] sm:$0xf]
      %v581 = vld [vmem:[%s3 + $0x88] sm:$0xf]
      %v582 = vld [vmem:[%s3 + $0x8c] sm:$0xf]
      %v583 = vld [vmem:[%s3 + $0x90] sm:$0xf]
      %v584 = vld [vmem:[%s3 + $0x94] sm:$0xf]
      %v585 = vld [vmem:[%s3 + $0x98] sm:$0xf]
      %v586 = vld [vmem:[%s3 + $0x9c] sm:$0xf]
      %v587 = vld [vmem:[%s3 + $0xa0] sm:$0xf]
      %v588 = vld [vmem:[%s3 + $0xa4] sm:$0xf]
      %v589 = vld [vmem:[%s3 + $0xa8] sm:$0xf]
      %v590 = vld [vmem:[%s3 + $0xac] sm:$0xf]
      %v591 = vld [vmem:[%s3 + $0xb0] sm:$0xf]
      %v592 = vld [vmem:[%s3 + $0xb4] sm:$0xf]
      %v593 = vld [vmem:[%s3 + $0xb8] sm:$0xf]
      %v594 = vld [vmem:[%s3 + $0xbc] sm:$0xf]
      %v643 = vunpack.c.l.b16 %v547
      %v644 = vunpack.c.l.b16 %v548
      %v645 = vunpack.c.l.b16 %v549
      %v646 = vunpack.c.l.b16 %v550
      %v647 = vunpack.c.l.b16 %v551
      %v648 = vunpack.c.l.b16 %v552
      %v649 = vunpack.c.l.b16 %v553
      %v650 = vunpack.c.l.b16 %v554
      %v651 = vunpack.c.l.b16 %v555
      %v652 = vunpack.c.l.b16 %v556
      %v653 = vunpack.c.l.b16 %v557
      %v654 = vunpack.c.l.b16 %v558
      %v655 = vunpack.c.l.b16 %v559
      %v656 = vunpack.c.l.b16 %v560
      %v657 = vunpack.c.l.b16 %v561
      %v658 = vunpack.c.l.b16 %v562
      %v659 = vunpack.c.l.b16 %v563
      %v660 = vunpack.c.l.b16 %v564
      %v661 = vunpack.c.l.b16 %v565
      %v662 = vunpack.c.l.b16 %v566
      %v663 = vunpack.c.l.b16 %v567
      %v664 = vunpack.c.l.b16 %v568
      %v665 = vunpack.c.l.b16 %v569
      %v666 = vunpack.c.l.b16 %v570
      %v667 = vunpack.c.l.b16 %v571
      %v668 = vunpack.c.l.b16 %v572
      %v669 = vunpack.c.l.b16 %v573
      %v670 = vunpack.c.l.b16 %v574
      %v671 = vunpack.c.l.b16 %v575
      %v672 = vunpack.c.l.b16 %v576
      %v673 = vunpack.c.l.b16 %v577
      %v674 = vunpack.c.l.b16 %v578
      %v675 = vunpack.c.l.b16 %v579
      %v676 = vunpack.c.l.b16 %v580
      %v677 = vunpack.c.l.b16 %v581
      %v678 = vunpack.c.l.b16 %v582
      %v679 = vunpack.c.l.b16 %v583
      %v680 = vunpack.c.l.b16 %v584
      %v681 = vunpack.c.l.b16 %v585
      %v682 = vunpack.c.l.b16 %v586
      %v683 = vunpack.c.l.b16 %v587
      %v684 = vunpack.c.l.b16 %v588
      %v685 = vunpack.c.l.b16 %v589
      %v686 = vunpack.c.l.b16 %v590
      %v687 = vunpack.c.l.b16 %v591
      %v688 = vunpack.c.l.b16 %v592
      %v689 = vunpack.c.l.b16 %v593
      %v690 = vunpack.c.l.b16 %v594
      %v691 = vpack.c.b16 %v644, %v643
      %v692 = vpack.c.b16 %v646, %v645
      %v693 = vpack.c.b16 %v648, %v647
      %v694 = vpack.c.b16 %v650, %v649
      %v695 = vpack.c.b16 %v652, %v651
      %v696 = vpack.c.b16 %v654, %v653
      %v697 = vpack.c.b16 %v656, %v655
      %v698 = vpack.c.b16 %v658, %v657
      %v699 = vpack.c.b16 %v660, %v659
      %v700 = vpack.c.b16 %v662, %v661
      %v701 = vpack.c.b16 %v664, %v663
      %v702 = vpack.c.b16 %v666, %v665
      %v703 = vpack.c.b16 %v668, %v667
      %v704 = vpack.c.b16 %v670, %v669
      %v705 = vpack.c.b16 %v672, %v671
      %v706 = vpack.c.b16 %v674, %v673
      %v707 = vpack.c.b16 %v676, %v675
      %v708 = vpack.c.b16 %v678, %v677
      %v709 = vpack.c.b16 %v680, %v679
      %v710 = vpack.c.b16 %v682, %v681
      %v711 = vpack.c.b16 %v684, %v683
      %v712 = vpack.c.b16 %v686, %v685
      %v713 = vpack.c.b16 %v688, %v687
      %v714 = vpack.c.b16 %v690, %v689
      %739 = vmatpush.bf16.msra.mxu0 %v698
      %740 = vmatpush.bf16.msra.mxu0 %v697
      %741 = vmatpush.bf16.msra.mxu0 %v696
      %742 = vmatpush.bf16.msra.mxu0 %v695
      %743 = vmatpush.bf16.msra.mxu0 %v694
      %744 = vmatpush.bf16.msra.mxu0 %v693
      %745 = vmatpush.bf16.msra.mxu0 %v692
      %746 = vmatpush.bf16.msra.mxu0 %v691
      %747 = vmatmul.bf16.gmra.mxu0 %v541
      %v748 = vpop.f32.mrf.mxu0
      %v749 = vadd.f32 %v486, %v748
      %v750 = vpop.f32.mrf.mxu0
      %v751 = vadd.f32 %v488, %v750
      %752 = vmatmul.bf16.gmra.mxu0 %v544
      %v753 = vpop.f32.mrf.mxu0
      %v754 = vadd.f32 %v491, %v753
      %v755 = vpop.f32.mrf.mxu0
      %756 = vdwg.mxu0
      %757 = vmatpush.bf16.msra.mxu0 %v706
      %758 = vmatpush.bf16.msra.mxu0 %v705
      %759 = vmatpush.bf16.msra.mxu0 %v704
      %760 = vmatpush.bf16.msra.mxu0 %v703
      %761 = vmatpush.bf16.msra.mxu0 %v702
      %762 = vmatpush.bf16.msra.mxu0 %v701
      %763 = vmatpush.bf16.msra.mxu0 %v700
      %764 = vmatpush.bf16.msra.mxu0 %v699
      %765 = vmatmul.bf16.gmra.mxu0 %v542
      %v766 = vpop.f32.mrf.mxu0
      %v767 = vadd.f32 %v749, %v766
      %v768 = vpop.f32.mrf.mxu0
      %v769 = vadd.f32 %v751, %v768
      %770 = vmatmul.bf16.gmra.mxu0 %v545
      %v771 = vpop.f32.mrf.mxu0
      %v772 = vadd.f32 %v754, %v771
      %v773 = vpop.f32.mrf.mxu0
      %774 = vdwg.mxu0
      %775 = vmatpush.bf16.msra.mxu0 %v714
      %776 = vmatpush.bf16.msra.mxu0 %v713
      %777 = vmatpush.bf16.msra.mxu0 %v712
      %778 = vmatpush.bf16.msra.mxu0 %v711
      %779 = vmatpush.bf16.msra.mxu0 %v710
      %780 = vmatpush.bf16.msra.mxu0 %v709
      %781 = vmatpush.bf16.msra.mxu0 %v708
      %782 = vmatpush.bf16.msra.mxu0 %v707
      %783 = vmatmul.bf16.gmra.mxu0 %v543
      %v784 = vpop.f32.mrf.mxu0
      %v785 = vadd.f32 %v767, %v784
      %v786 = vpop.f32.mrf.mxu0
      %v787 = vadd.f32 %v769, %v786
      %788 = vmatmul.bf16.gmra.mxu0 %v546
      %v789 = vpop.f32.mrf.mxu0
      %v790 = vadd.f32 %v772, %v789
      %v791 = vpop.f32.mrf.mxu0
      %792 = vdwg.mxu0
      %v793 = vld [vmem:[%s4] sm:$0x1]
      %v795 = vperm.slane %v793, 0
      %v797 = vadd.f32 %v785, %v795
      %v798 = vadd.f32 %v787, %v795
      %v799 = vadd.f32 %v790, %v795
      %v800 = vmax.f32 %v797, 0.0
      %v801 = vmax.f32 %v798, 0.0
      %v802 = vmax.f32 %v799, 0.0
      %803 = vst [vmem:[%s251] sm:$0xff] %v800
      %804 = vst [vmem:[%s251 + $0x8] sm:$0xff] %v801
      %805 = vst [vmem:[%s251 + $0x10] sm:$0xff] %v802
      %p806 = scmp.lt.s32.totalorder %s17, 1
      %s807 = scalar_select %p806, %s17, 1
      %s808 = smul.addr %s807, 3
      %s809 = smul.addr %s808, 8
      %s810 = scalar_lea.vmem %s6, %s809
      // Predicated region
      $region45: #{residual_block_forward.1} parent=43 // pred_check
        %p811 = pneg %p166
      $region46: #{residual_block_forward.1} parent=43 // pred_check_branch
        %813 = sbr.rel (%p811) target = $region48
      $region47: #{residual_block_forward.1} parent=43 // pred_region
        _
      $region48: #{residual_block_forward.1} parent=43 // pred_fallthru
        _
    $region44: #{residual_block_forward.1} parent=5 // pred_fallthru
      _
    %p814 = scmp.le.s32.totalorder 2, %s12
    // Predicated region
    $region49: #{residual_block_forward.1} parent=5 // pred_check
      %p815 = pneg %p814
    $region50: #{residual_block_forward.1} parent=5 // pred_check_branch
      %817 = sbr.rel (%p815) target = $region52
    $region51: #{residual_block_forward.1} parent=5 // pred_region
      %s818 = ssub.s32 %s12, 2
      // Predicated region
      $region53: #{residual_block_forward.1} parent=51 // pred_check
        %p819 = pneg %p172
      $region54: #{residual_block_forward.1} parent=51 // pred_check_branch
        %821 = sbr.rel (%p819) target = $region56
      $region55: #{residual_block_forward.1} parent=51 // pred_region
        %p822 = scmp.lt.s32.totalorder %s18, 1
        %s823 = scalar_select %p822, %s18, 1
        %s824 = smul.addr %s823, 3
        %s825 = smul.addr %s824, 8
        %s826 = scalar_lea.vmem %s6, %s825
      $region56: #{residual_block_forward.1} parent=51 // pred_fallthru
        _
    $region52: #{residual_block_forward.1} parent=5 // pred_fallthru
      _
  $region6: #{residual_block_forward.1} parent=0 // loop_footer
    %s16 = sadd.s32 1, %s12
  $region7: #{residual_block_forward.1} parent=0 // loop_footer_branch
    %11 = sbr.rel target = $region3
  $region8: #{residual_block_forward.1} parent=0 // loop_exit
    _

</llo_original>
